<compile_context>
chip_gen: v5e
topology: v5e:2x2
jax: 0.10.0
libtpu: 0.0.40
codegen_flags: <defaults>
</compile_context>

<pallas_src>
import jax
import jax.numpy as jnp
from jax.experimental import pallas as pl
from jax.experimental.pallas import tpu as pltpu


def _round_up(x, m):
    return m * pl.cdiv(x, m)


def _pad_rows(a, n_pad):
    pad = n_pad - a.shape[0]
    if pad == 0:
        return a
    return jnp.pad(a, ((0, pad),) + ((0, 0),) * (a.ndim - 1))


# ---------------------------------------------------------------------------
# Pallas kernel 1: fused gating GEMM (alpha already folded into wg / bg)
# ---------------------------------------------------------------------------
def gate_kernel(xt_ref, wg_ref, bg_ref, o_ref):
    o_ref[...] = (
        jnp.dot(xt_ref[...], wg_ref[...], preferred_element_type=jnp.float32)
        + bg_ref[...]
    ).astype(o_ref.dtype)


def moe_gate_logits(x, t, params, *, tile_n=256):
    """(1-a)*input_gate(x) + a*task_gate(t) as one fused, N-tiled GEMM (f32)."""
    n, _ = x.shape
    alpha = params["alpha"].astype(jnp.float32)
    # Fold alpha into a stacked weight / blended bias.
    wg = jnp.concatenate(
        [(1.0 - alpha) * params["wgi"], alpha * params["wgt"]], axis=0
    ).astype(jnp.float32)                                         # (D+T, E)
    bg = ((1.0 - alpha) * params["bgi"] + alpha * params["bgt"]).astype(jnp.float32)

    e = wg.shape[1]
    ep = _round_up(e, 128)                                        # lane-dense output
    wg_p = jnp.pad(wg, ((0, 0), (0, ep - e)))
    bg_p = jnp.pad(bg, ((0, 0), (0, ep - e)))

    xt = jnp.concatenate([x.astype(jnp.float32), t.astype(jnp.float32)], axis=1)
    n_pad = _round_up(n, tile_n)
    xt_p = _pad_rows(xt, n_pad)
    dt = xt_p.shape[1]

    logits_p = pl.pallas_call(
        gate_kernel,
        out_shape=jax.ShapeDtypeStruct((n_pad, ep), jnp.float32),
        grid=(n_pad // tile_n,),
        in_specs=[
            pl.BlockSpec((tile_n, dt), lambda i: (i, 0)),         # [x | t] token tile
            pl.BlockSpec((dt, ep), lambda i: (0, 0)),             # stacked gate weight
            pl.BlockSpec((1, ep), lambda i: (0, 0)),              # blended gate bias
        ],
        out_specs=pl.BlockSpec((tile_n, ep), lambda i: (i, 0)),
        compiler_params=pltpu.CompilerParams(dimension_semantics=("parallel",)),
    )(xt_p, wg_p, bg_p)
    return logits_p[:n, :e]                                       # (N, E) f32


# ---------------------------------------------------------------------------
# Pallas kernel 2: experts streamed over an 'arbitrary' grid axis + weighted
# combine into a VMEM accumulator (P3 pattern).
# ---------------------------------------------------------------------------
def moe_expert_kernel(x_ref, w1_ref, b1_ref, w2_ref, b2_ref, cw_ref, o_ref, acc_ref):
    j = pl.program_id(1)                      # expert index (reduction axis)

    @pl.when(j == 0)
    def _init():
        acc_ref[...] = jnp.zeros_like(acc_ref)

    # Expert MLP: bf16 (or f32) MXU operands, f32 accumulation, f32 ReLU/bias.
    x = x_ref[...]                                                 # (TN, D)
    h = jnp.dot(x, w1_ref[...], preferred_element_type=jnp.float32) + b1_ref[...]
    h = jnp.maximum(h, 0.0)
    y = jnp.dot(h.astype(w2_ref.dtype), w2_ref[...],
                preferred_element_type=jnp.float32) + b2_ref[...]  # (TN, D) f32

    # Select this expert's combine weight column (0 if token not routed here).
    cw = cw_ref[...]                                               # (TN, E) f32
    lane = jax.lax.broadcasted_iota(jnp.int32, cw.shape, 1)
    w_j = jnp.sum(jnp.where(lane == j, cw, 0.0), axis=1, keepdims=True)  # (TN, 1)

    acc_ref[...] += w_j * y

    @pl.when(j == pl.num_programs(1) - 1)
    def _finalize():
        o_ref[...] = acc_ref[...].astype(o_ref.dtype)


def moe_combine_pallas(x, w1, b1, w2, b2, combine, *, tile_n, out_dtype):
    n_pad, d = x.shape
    n_exp, _, h = w1.shape
    assert n_pad % tile_n == 0
    return pl.pallas_call(
        moe_expert_kernel,
        out_shape=jax.ShapeDtypeStruct((n_pad, d), out_dtype),
        grid=(n_pad // tile_n, n_exp),
        in_specs=[
            pl.BlockSpec((tile_n, d), lambda i, j: (i, 0)),        # x tokens (reused over j)
            pl.BlockSpec((None, d, h), lambda i, j: (j, 0, 0)),    # w1[j] streamed
            pl.BlockSpec((None, 1, h), lambda i, j: (j, 0, 0)),    # b1[j]
            pl.BlockSpec((None, h, d), lambda i, j: (j, 0, 0)),    # w2[j] streamed
            pl.BlockSpec((None, 1, d), lambda i, j: (j, 0, 0)),    # b2[j]
            pl.BlockSpec((tile_n, n_exp), lambda i, j: (i, 0)),    # combine weights
        ],
        out_specs=pl.BlockSpec((tile_n, d), lambda i, j: (i, 0)),
        scratch_shapes=[pltpu.VMEM((tile_n, d), jnp.float32)],
        compiler_params=pltpu.CompilerParams(
            dimension_semantics=("parallel", "arbitrary"),
            vmem_limit_bytes=48 * 1024 * 1024,   # cross-gen safe (< v7x 64 MiB)
        ),
    )(x, w1, b1, w2, b2, combine)


# ---------------------------------------------------------------------------
# Full MoeLayer.forward
# ---------------------------------------------------------------------------
def moe_forward(inputs, task_param, params, num_experts_per_tok, *,
                tile_n=256, mxu_dtype=jnp.bfloat16):
    b, s, d = inputs.shape
    n = b * s
    num_experts = params["wgi"].shape[1]
    x = inputs.reshape(n, d)
    t = task_param.reshape(n, -1)

    # Gating (Pallas, f32 so routing is stable).
    gate_logits = moe_gate_logits(x, t, params, tile_n=tile_n)    # (N, E) f32

    # Routing glue (torch.topk / softmax / one_hot / l_aux) in plain JAX.
    topk_vals, selected = jax.lax.top_k(gate_logits, num_experts_per_tok)
    probs = jax.nn.softmax(gate_logits, axis=-1)
    average_weight = jnp.mean(probs, axis=0)
    onehot = jax.nn.one_hot(selected, num_experts, dtype=jnp.float32)   # (N, K, E)
    average_count = jnp.mean(onehot.sum(axis=1), axis=0)
    l_aux = jnp.mean(average_weight * average_count) * num_experts
    weights = jax.nn.softmax(topk_vals, axis=-1)                        # (N, K) f32
    combine = jnp.einsum("nk,nke->ne", weights, onehot)                 # (N, E) f32

    # Expert compute + weighted scatter-add (Pallas). Pad N, cast MXU operands.
    n_pad = _round_up(n, tile_n)
    x_p = _pad_rows(x.astype(jnp.float32), n_pad).astype(mxu_dtype)
    cw_p = _pad_rows(combine, n_pad)                                    # padded rows: weight 0
    out_p = moe_combine_pallas(
        x_p,
        params["w1"].astype(mxu_dtype), params["b1"].astype(jnp.float32),
        params["w2"].astype(mxu_dtype), params["b2"].astype(jnp.float32),
        cw_p, tile_n=tile_n, out_dtype=inputs.dtype)
    out = out_p[:n].reshape(b, s, d)
    return out, l_aux.astype(jnp.float32)


# ---------------------------------------------------------------------------
# Pure-JAX reference mirroring the torch per-expert where/scatter loop.
# `gate_logits` may be supplied to share routing (tie-robust comparison);
# `mxu_dtype` optionally mirrors the kernel's MXU-operand cast.
# ---------------------------------------------------------------------------
def ref_forward(inputs, task_param, params, num_experts_per_tok, *,
                gate_logits=None, mxu_dtype=jnp.float32):
    b, s, d = inputs.shape
    n = b * s
    x = inputs.reshape(n, d).astype(jnp.float32)
    t = task_param.reshape(n, -1).astype(jnp.float32)
    num_experts = params["wgi"].shape[1]
    alpha = params["alpha"]
    if gate_logits is None:
        # Algebraically identical to (1-a)*input_gate(x) + a*task_gate(t).
        wg = jnp.concatenate([(1 - alpha) * params["wgi"], alpha * params["wgt"]], 0)
        bg = (1 - alpha) * params["bgi"] + alpha * params["bgt"]
        gate_logits = jnp.concatenate([x, t], axis=1) @ wg + bg

    topk_vals, sel = jax.lax.top_k(gate_logits, num_experts_per_tok)
    probs = jax.nn.softmax(gate_logits, axis=-1)
    avg_w = probs.mean(0)
    avg_c = jax.nn.one_hot(sel, num_experts, dtype=jnp.float32).sum(1).mean(0)
    l_aux = jnp.mean(avg_w * avg_c) * num_experts
    w = jax.nn.softmax(topk_vals, axis=-1)

    res = jnp.zeros((n, d), jnp.float32)
    xm = x.astype(mxu_dtype)
    for i in range(num_experts):
        mask = (sel == i).astype(jnp.float32)                     # (N, K)
        wi = (w * mask).sum(-1, keepdims=True)                    # (N, 1), 0 if unrouted
        h = jnp.dot(xm, params["w1"][i].astype(mxu_dtype),
                    preferred_element_type=jnp.float32) + params["b1"][i]
        h = jnp.maximum(h, 0.0)
        y = jnp.dot(h.astype(mxu_dtype), params["w2"][i].astype(mxu_dtype),
                    preferred_element_type=jnp.float32) + params["b2"][i]
        res = res + wi * y
    return res.reshape(b, s, d).astype(inputs.dtype), l_aux


if __name__ == "__main__":
    # batch, seq, model, hidden, task, experts, top-k  (N = 480, padded to 512)
    B, S, D, H, T, E, K = 4, 120, 128, 256, 64, 4, 2
    TILE_N = 256

    key = jax.random.PRNGKey(0)
    ks = jax.random.split(key, 10)
    params = {
        "alpha": jnp.asarray(0.5, jnp.float32),                        # nn.Parameter(0.5)
        "wgi": 0.1 * jax.random.normal(ks[0], (D, E), jnp.float32),    # input_gate Linear(D,E)
        "bgi": 0.1 * jax.random.normal(ks[1], (1, E), jnp.float32),
        "wgt": 0.1 * jax.random.normal(ks[2], (T, E), jnp.float32),    # task_gate Linear(T,E)
        "bgt": 0.1 * jax.random.normal(ks[3], (1, E), jnp.float32),
        "w1": 0.1 * jax.random.normal(ks[4], (E, D, H), jnp.float32),  # experts Linear(D,H)
        "b1": 0.1 * jax.random.normal(ks[5], (E, 1, H), jnp.float32),
        "w2": 0.1 * jax.random.normal(ks[6], (E, H, D), jnp.float32),  # experts Linear(H,D)
        "b2": 0.1 * jax.random.normal(ks[7], (E, 1, D), jnp.float32),
    }
    inputs = jax.random.normal(ks[8], (B, S, D), jnp.float32)
    task_param = jax.random.normal(ks[9], (B, S, T), jnp.float32)

    out, l_aux = moe_forward(inputs, task_param, params, K,
                             tile_n=TILE_N, mxu_dtype=jnp.bfloat16)
    out, l_aux = jax.block_until_ready((out, l_aux))
    assert out.shape == inputs.shape and out.dtype == inputs.dtype
    assert l_aux.shape == () and l_aux.dtype == jnp.float32

    # 1) Pallas gate vs torch-literal gate (tolerance covers MXU f32-precision diffs).
    x2 = inputs.reshape(-1, D)
    t2 = task_param.reshape(-1, T)
    gl_pallas = moe_gate_logits(x2, t2, params, tile_n=TILE_N)
    a = params["alpha"]
    gl_ref = (1 - a) * (x2 @ params["wgi"] + params["bgi"]) \
        + a * (t2 @ params["wgt"] + params["bgt"])
    assert jnp.allclose(gl_pallas, gl_ref, rtol=2e-2, atol=2e-2)

    # 2) End-to-end vs reference sharing the Pallas gate logits (tie-robust),
    #    reference experts use the same bf16 MXU-operand rounding.
    ref_out, ref_l = ref_forward(inputs, task_param, params, K,
                                 gate_logits=gl_pallas, mxu_dtype=jnp.bfloat16)
    assert jnp.allclose(out, ref_out, rtol=2e-3, atol=2e-3)
    assert jnp.allclose(l_aux, ref_l, rtol=1e-5, atol=1e-5)

    # 3) Against full-f32 expert math (bf16-MXU kernel stays within loose tolerance).
    ref_out32, _ = ref_forward(inputs, task_param, params, K,
                               gate_logits=gl_pallas, mxu_dtype=jnp.float32)
    assert jnp.allclose(out, ref_out32, rtol=5e-2, atol=5e-2)

    print("KERNEL_OK")
</pallas_src>

<mosaic_0001>
module attributes {stable_mosaic.version = 11 : i64} {
  func.func @gate_kernel(%arg0: i32, %arg1: memref<256x192xf32, #tpu.memory_space<vmem>>, %arg2: memref<192x128xf32, #tpu.memory_space<vmem>>, %arg3: memref<1x128xf32, #tpu.memory_space<vmem>>, %arg4: memref<256x128xf32, #tpu.memory_space<vmem>>) attributes {dimension_semantics = [#tpu.dimension_semantics<parallel>], iteration_bounds = array<i64: 2>, scalar_prefetch = 0 : i64, scratch_operands = 0 : i64, tpu.core_type = #tpu.core_type<tc>, window_params = [{transform_indices = @transform_0, window_bounds = array<i64: 256, 192>}, {pipeline_mode = #tpu.pipeline_mode<synchronous>, transform_indices = @transform_1, window_bounds = array<i64: 192, 128>}, {pipeline_mode = #tpu.pipeline_mode<synchronous>, transform_indices = @transform_2, window_bounds = array<i64: 1, 128>}, {transform_indices = @transform_3, window_bounds = array<i64: 256, 128>}]} {
    %c0 = arith.constant 0 : index
    %c0_0 = arith.constant 0 : index
    %0 = vector.load %arg1[%c0, %c0_0] : memref<256x192xf32, #tpu.memory_space<vmem>>, vector<256x192xf32>
    %c0_1 = arith.constant 0 : index
    %c0_2 = arith.constant 0 : index
    %1 = vector.load %arg2[%c0_1, %c0_2] : memref<192x128xf32, #tpu.memory_space<vmem>>, vector<192x128xf32>
    %cst = arith.constant dense<0.000000e+00> : vector<256x128xf32>
    %2 = tpu.matmul %0, %1, %cst {dimension_numbers = #tpu.dot_dimension_numbers<[1], [0], [0], [1], [0, 0, 1, 1], [], []>} : vector<256x192xf32>, vector<192x128xf32>, vector<256x128xf32> -> vector<256x128xf32>
    %c0_3 = arith.constant 0 : index
    %c0_4 = arith.constant 0 : index
    %3 = vector.load %arg3[%c0_3, %c0_4] : memref<1x128xf32, #tpu.memory_space<vmem>>, vector<1x128xf32>
    %4 = vector.broadcast %3 : vector<1x128xf32> to vector<256x128xf32>
    %5 = arith.addf %2, %4 : vector<256x128xf32>
    %c0_5 = arith.constant 0 : index
    %c0_6 = arith.constant 0 : index
    %6 = vector.load %arg4[%c0_5, %c0_6] : memref<256x128xf32, #tpu.memory_space<vmem>>, vector<256x128xf32>
    tpu.vector_store %arg4[%c0_5, %c0_6], %5 {strides = array<i32>} : memref<256x128xf32, #tpu.memory_space<vmem>>, vector<256x128xf32>,
    return
  }
  func.func @transform_0(%arg0: i32) -> (i32, i32) {
    %c0_i32 = arith.constant 0 : i32
    %c0_i32_0 = arith.constant 0 : i32
    return %arg0, %c0_i32 : i32, i32
  }
  func.func @transform_1(%arg0: i32) -> (i32, i32) {
    %c0_i32 = arith.constant 0 : i32
    %c0_i32_0 = arith.constant 0 : i32
    %c0_i32_1 = arith.constant 0 : i32
    return %c0_i32, %c0_i32_0 : i32, i32
  }
  func.func @transform_2(%arg0: i32) -> (i32, i32) {
    %c0_i32 = arith.constant 0 : i32
    %c0_i32_0 = arith.constant 0 : i32
    %c0_i32_1 = arith.constant 0 : i32
    return %c0_i32, %c0_i32_0 : i32, i32
  }
  func.func @transform_3(%arg0: i32) -> (i32, i32) {
    %c0_i32 = arith.constant 0 : i32
    %c0_i32_0 = arith.constant 0 : i32
    return %arg0, %c0_i32 : i32, i32
  }
}

</mosaic_0001>

<llo_original>
// kernel: tpu_custom_call.1
$region0: #{tpu_custom_call.1}
  #allocation0 [shape = 'u32[]', space=smem, size = 0x4, offset = 0x4, fixed_abs, tag = 'smem constant byte address 0x4 - core index']
  #allocation1 [shape = 'u32[72,128]{1,0:T(1,128)}', space=vmem, size = 0x9000, scoped, tag = 'internal scratch']
  %s0 = inlined_call_operand.vmem [shape: f32[512,192], index: 0, kind: input, shape index: {}]
  %s1 = inlined_call_operand.vmem [shape: f32[192,128], index: 1, kind: input, shape index: {}]
  %s2 = inlined_call_operand.vmem [shape: f32[1,128], index: 2, kind: input, shape index: {}]
  %s3 = inlined_call_operand.hbm [shape: f32[512,128], index: 3, kind: output, shape index: {}]
  %s4 = sld [smem:[#allocation0]]
  $region45: #{tpu_custom_call.1} parent=0
    _
  %s6 = ssub.s32 1, %s4
  %s7 = scalar_select 0, %s6, %s4
  $region1: #{tpu_custom_call.1} parent=0
    #allocation2 [shape = 'u8[262144]{0}', space=vmem, size = 0x40000, scoped, tag = 'output window, operand 0']
    #allocation3 [shape = 's32[2]{0}', space=sflag, size = 0x8, scoped, tag = 'scoped memory for tpu_custom_call.1']
    %8 = vsyncpa [#allocation3], 0
    %s9 = scalar_lea.sflag [#allocation3], 1
    %10 = vsyncpa %s9, 0
    loop: start=0, step=1, limit=4
    $region2: #{tpu_custom_call.1} parent=1 // loop_pre_header
      _
    $region3: #{tpu_custom_call.1} parent=1 // loop_header
      %s12 = sphi 0, %s16
      %p13 = scmp.ge.s32.totalorder %s12, 4
      %s22 = sphi 0, %s24
      %s25 = sphi 0, %s22
      %s26 = sphi 0, %s25
      %s42 = sphi 0, %s26
      %s46 = sphi 0, %s46
      %s48 = sphi 0, %s46
      %s49 = sphi 0, %s48
      %s63 = sphi 0, %s49
      %s67 = sphi 0, %s67
      %s69 = sphi 0, %s67
      %s70 = sphi 0, %s69
      %s84 = sphi 0, %s70
      %s90 = sphi 0, %s92
      %s93 = sphi 0, %s90
      %s94 = sphi 0, %s93
      %s110 = sphi 0, %s94
    $region4: #{tpu_custom_call.1} parent=1 // loop_header_branch
      %15 = sbr.rel (%p13) target = $region8
    $region5: #{tpu_custom_call.1} parent=1 // loop_body
      %s17 = ssub.s32 %s12, 1
      %s18 = ssub.s32 %s12, 2
      %s19 = sadd.s32 %s12, 1
      %s20 = ssub.s32 %s12, %s19
      %p21 = scmp.eq.s32.totalorder %s20, 0
      %s23 = sadd.s32 %s22, 1
      %s24 = scalar_select %p21, %s22, %s23
      %p27 = pneg %p21
      %p28 = scmp.eq.s32.totalorder %s12, 1
      %p29 = por %p27, %p28
      %p30 = scmp.ne.s32.totalorder %s22, %s25
      %p31 = scmp.eq.s32.totalorder %s12, 0
      %p32 = por %p30, %p31
      %p33 = scmp.ne.s32.totalorder %s22, %s25
      %p34 = scmp.eq.s32.totalorder %s17, 1
      %p35 = por %p33, %p34
      %p36 = scmp.ne.s32.totalorder %s25, %s26
      %p37 = scmp.eq.s32.totalorder %s17, 0
      %p38 = por %p36, %p37
      %p39 = scmp.ne.s32.totalorder %s25, %s26
      %p40 = scmp.eq.s32.totalorder %s18, 1
      %p41 = por %p39, %p40
      %p43 = scmp.ne.s32.totalorder %s26, %s42
      %p44 = scmp.eq.s32.totalorder %s18, 0
      %p45 = por %p43, %p44
      %s47 = sadd.s32 %s46, 1
      %p50 = scmp.eq.s32.totalorder %s12, 1
      %p51 = scmp.ne.s32.totalorder %s46, %s48
      %p52 = scmp.eq.s32.totalorder %s12, 0
      %p53 = por %p51, %p52
      %p54 = scmp.ne.s32.totalorder %s46, %s48
      %p55 = scmp.eq.s32.totalorder %s17, 1
      %p56 = por %p54, %p55
      %p57 = scmp.ne.s32.totalorder %s48, %s49
      %p58 = scmp.eq.s32.totalorder %s17, 0
      %p59 = por %p57, %p58
      %p60 = scmp.ne.s32.totalorder %s48, %s49
      %p61 = scmp.eq.s32.totalorder %s18, 1
      %p62 = por %p60, %p61
      %p64 = scmp.ne.s32.totalorder %s49, %s63
      %p65 = scmp.eq.s32.totalorder %s18, 0
      %p66 = por %p64, %p65
      %s68 = sadd.s32 %s67, 1
      %p71 = scmp.eq.s32.totalorder %s12, 1
      %p72 = scmp.ne.s32.totalorder %s67, %s69
      %p73 = scmp.eq.s32.totalorder %s12, 0
      %p74 = por %p72, %p73
      %p75 = scmp.ne.s32.totalorder %s67, %s69
      %p76 = scmp.eq.s32.totalorder %s17, 1
      %p77 = por %p75, %p76
      %p78 = scmp.ne.s32.totalorder %s69, %s70
      %p79 = scmp.eq.s32.totalorder %s17, 0
      %p80 = por %p78, %p79
      %p81 = scmp.ne.s32.totalorder %s69, %s70
      %p82 = scmp.eq.s32.totalorder %s18, 1
      %p83 = por %p81, %p82
      %p85 = scmp.ne.s32.totalorder %s70, %s84
      %p86 = scmp.eq.s32.totalorder %s18, 0
      %p87 = por %p85, %p86
      %s88 = ssub.s32 %s12, %s19
      %p89 = scmp.eq.s32.totalorder %s88, 0
      %s91 = sadd.s32 %s90, 1
      %s92 = scalar_select %p89, %s90, %s91
      %p95 = pneg %p89
      %p96 = scmp.eq.s32.totalorder %s12, 1
      %p97 = por %p95, %p96
      %p98 = scmp.ne.s32.totalorder %s90, %s93
      %p99 = scmp.eq.s32.totalorder %s12, 0
      %p100 = por %p98, %p99
      %p101 = scmp.ne.s32.totalorder %s90, %s93
      %p102 = scmp.eq.s32.totalorder %s17, 1
      %p103 = por %p101, %p102
      %p104 = scmp.ne.s32.totalorder %s93, %s94
      %p105 = scmp.eq.s32.totalorder %s17, 0
      %p106 = por %p104, %p105
      %p107 = scmp.ne.s32.totalorder %s93, %s94
      %p108 = scmp.eq.s32.totalorder %s18, 1
      %p109 = por %p107, %p108
      %p111 = scmp.ne.s32.totalorder %s94, %s110
      %p112 = scmp.eq.s32.totalorder %s18, 0
      %p113 = por %p111, %p112
      %p114 = scmp.le.s32.totalorder 1, %s12
      %p115 = scmp.lt.s32.totalorder %s12, 3
      %p116 = pnand %p114, %p115
      %p117 = pneg %p116
      // Predicated region
      $region9: #{tpu_custom_call.1} parent=5 // pred_check
        _
      $region10: #{tpu_custom_call.1} parent=5 // pred_check_branch
        %119 = sbr.rel (%p116) target = $region12
      $region11: #{tpu_custom_call.1} parent=5 // pred_region
        %s120 = ssub.s32 %s12, 1
        // Predicated region
        $region13: #{tpu_custom_call.1} parent=11 // pred_check
          %p121 = pneg %p59
        $region14: #{tpu_custom_call.1} parent=11 // pred_check_branch
          %123 = sbr.rel (%p121) target = $region16
        $region15: #{tpu_custom_call.1} parent=11 // pred_region
          _
        $region16: #{tpu_custom_call.1} parent=11 // pred_fallthru
          _
        // Predicated region
        $region17: #{tpu_custom_call.1} parent=11 // pred_check
          %p124 = pneg %p80
        $region18: #{tpu_custom_call.1} parent=11 // pred_check_branch
          %126 = sbr.rel (%p124) target = $region20
        $region19: #{tpu_custom_call.1} parent=11 // pred_region
          _
        $region20: #{tpu_custom_call.1} parent=11 // pred_fallthru
          _
      $region12: #{tpu_custom_call.1} parent=5 // pred_fallthru
        _
      %p127 = scmp.lt.s32.totalorder %s12, 2
      // Predicated region
      $region21: #{tpu_custom_call.1} parent=5 // pred_check
        %p128 = pneg %p127
      $region22: #{tpu_custom_call.1} parent=5 // pred_check_branch
        %130 = sbr.rel (%p128) target = $region24
      $region23: #{tpu_custom_call.1} parent=5 // pred_region
        // Predicated region
        $region25: #{tpu_custom_call.1} parent=23 // pred_check
          %p131 = pneg %p32
        $region26: #{tpu_custom_call.1} parent=23 // pred_check_branch
          %133 = sbr.rel (%p131) target = $region28
        $region27: #{tpu_custom_call.1} parent=23 // pred_region
          %s134 = smul.u32 32, %s12
          %p135 = scmp.lt.s32.totalorder %s134, 63
          %s136 = scalar_select %p135, %s134, 63
          %s137 = smul.addr %s136, 2
          %s138 = smul.addr %s137, 8
          %s139 = scalar_lea.vmem %s0, %s138
          %s140 = smul.u32 32, %s12
        $region28: #{tpu_custom_call.1} parent=23 // pred_fallthru
          _
      $region24: #{tpu_custom_call.1} parent=5 // pred_fallthru
        _
      %p141 = scmp.le.s32.totalorder 1, %s12
      %p142 = scmp.lt.s32.totalorder %s12, 3
      %p143 = pnand %p141, %p142
      %p144 = pneg %p143
      // Predicated region
      $region29: #{tpu_custom_call.1} parent=5 // pred_check
        _
      $region30: #{tpu_custom_call.1} parent=5 // pred_check_branch
        %146 = sbr.rel (%p143) target = $region32
      $region31: #{tpu_custom_call.1} parent=5 // pred_region
        %s147 = ssub.s32 %s12, 1
        %s148 = smul.u32 32, %s17
        %p149 = scmp.lt.s32.totalorder %s148, 63
        %s150 = scalar_select %p149, %s148, 63
        %s151 = smul.addr %s150, 2
        %s152 = smul.addr %s151, 8
        %s153 = scalar_lea.vmem %s0, %s152
        %p154 = pneg %p38
        %p155 = pneg %p35
        %p156 = pneg %p59
        %p157 = pneg %p56
        %p158 = pneg %p80
        %p159 = pneg %p77
        %p160 = pneg %p106
        %p161 = pneg %p103
        %s162 = sand.u32 %s93, 1
        %s163 = scalar_lea.sflag [#allocation3], %s162
        %s164 = sand.u32 %s93, 1
        %s165 = smul.addr %s164, 256
        %s166 = scalar_lea.vmem [#allocation2], %s165
        %s167 = smul.u32 32, %s17
        %p168 = scmp.lt.s32.totalorder %s167, 63
        %s169 = scalar_select %p168, %s167, 63
        %s170 = smul.addr %s169, 2
        %s171 = smul.addr %s170, 8
        %s172 = scalar_lea.vmem %s0, %s171
        %s173 = smul.u32 32, %s17
        %s174 = smul.u32 32, %s17
        %v175 = vld [vmem:[%s172] sm:$0xff]
        %v176 = vld [vmem:[%s172 + $0x8] sm:$0xff]
        %v177 = vld [vmem:[%s172 + $0x10] sm:$0xff]
        %v178 = vld [vmem:[%s172 + $0x18] sm:$0xff]
        %v179 = vld [vmem:[%s172 + $0x20] sm:$0xff]
        %v180 = vld [vmem:[%s172 + $0x28] sm:$0xff]
        %v181 = vld [vmem:[%s172 + $0x30] sm:$0xff]
        %v182 = vld [vmem:[%s172 + $0x38] sm:$0xff]
        %v183 = vld [vmem:[%s172 + $0x40] sm:$0xff]
        %v184 = vld [vmem:[%s172 + $0x48] sm:$0xff]
        %v185 = vld [vmem:[%s172 + $0x50] sm:$0xff]
        %v186 = vld [vmem:[%s172 + $0x58] sm:$0xff]
        %v187 = vld [vmem:[%s172 + $0x60] sm:$0xff]
        %v188 = vld [vmem:[%s172 + $0x68] sm:$0xff]
        %v189 = vld [vmem:[%s172 + $0x70] sm:$0xff]
        %v190 = vld [vmem:[%s172 + $0x78] sm:$0xff]
        %v191 = vld [vmem:[%s172 + $0x80] sm:$0xff]
        %v192 = vld [vmem:[%s172 + $0x88] sm:$0xff]
        %v193 = vld [vmem:[%s172 + $0x90] sm:$0xff]
        %v194 = vld [vmem:[%s172 + $0x98] sm:$0xff]
        %v195 = vld [vmem:[%s172 + $0xa0] sm:$0xff]
        %v196 = vld [vmem:[%s172 + $0xa8] sm:$0xff]
        %v197 = vld [vmem:[%s172 + $0xb0] sm:$0xff]
        %v198 = vld [vmem:[%s172 + $0xb8] sm:$0xff]
        %v199 = vld [vmem:[%s172 + $0xc0] sm:$0xff]
        %v200 = vld [vmem:[%s172 + $0xc8] sm:$0xff]
        %v201 = vld [vmem:[%s172 + $0xd0] sm:$0xff]
        %v202 = vld [vmem:[%s172 + $0xd8] sm:$0xff]
        %v203 = vld [vmem:[%s172 + $0xe0] sm:$0xff]
        %v204 = vld [vmem:[%s172 + $0xe8] sm:$0xff]
        %v205 = vld [vmem:[%s172 + $0xf0] sm:$0xff]
        %v206 = vld [vmem:[%s172 + $0xf8] sm:$0xff]
        %v207 = vld [vmem:[%s172 + $0x100] sm:$0xff]
        %v208 = vld [vmem:[%s172 + $0x108] sm:$0xff]
        %v209 = vld [vmem:[%s172 + $0x110] sm:$0xff]
        %v210 = vld [vmem:[%s172 + $0x118] sm:$0xff]
        %v211 = vld [vmem:[%s172 + $0x120] sm:$0xff]
        %v212 = vld [vmem:[%s172 + $0x128] sm:$0xff]
        %v213 = vld [vmem:[%s172 + $0x130] sm:$0xff]
        %v214 = vld [vmem:[%s172 + $0x138] sm:$0xff]
        %v215 = vld [vmem:[%s172 + $0x140] sm:$0xff]
        %v216 = vld [vmem:[%s172 + $0x148] sm:$0xff]
        %v217 = vld [vmem:[%s172 + $0x150] sm:$0xff]
        %v218 = vld [vmem:[%s172 + $0x158] sm:$0xff]
        %v219 = vld [vmem:[%s172 + $0x160] sm:$0xff]
        %v220 = vld [vmem:[%s172 + $0x168] sm:$0xff]
        %v221 = vld [vmem:[%s172 + $0x170] sm:$0xff]
        %v222 = vld [vmem:[%s172 + $0x178] sm:$0xff]
        %v223 = vld [vmem:[%s172 + $0x180] sm:$0xff]
        %v224 = vld [vmem:[%s172 + $0x188] sm:$0xff]
        %v225 = vld [vmem:[%s172 + $0x190] sm:$0xff]
        %v226 = vld [vmem:[%s172 + $0x198] sm:$0xff]
        %v227 = vld [vmem:[%s172 + $0x1a0] sm:$0xff]
        %v228 = vld [vmem:[%s172 + $0x1a8] sm:$0xff]
        %v229 = vld [vmem:[%s172 + $0x1b0] sm:$0xff]
        %v230 = vld [vmem:[%s172 + $0x1b8] sm:$0xff]
        %v231 = vld [vmem:[%s172 + $0x1c0] sm:$0xff]
        %v232 = vld [vmem:[%s172 + $0x1c8] sm:$0xff]
        %v233 = vld [vmem:[%s172 + $0x1d0] sm:$0xff]
        %v234 = vld [vmem:[%s172 + $0x1d8] sm:$0xff]
        %v235 = vld [vmem:[%s172 + $0x1e0] sm:$0xff]
        %v236 = vld [vmem:[%s172 + $0x1e8] sm:$0xff]
        %v237 = vld [vmem:[%s172 + $0x1f0] sm:$0xff]
        %v238 = vld [vmem:[%s172 + $0x1f8] sm:$0xff]
        %v239 = vld [vmem:[%s1] sm:$0xff]
        %v240 = vld [vmem:[%s1 + $0x8] sm:$0xff]
        %v241 = vld [vmem:[%s1 + $0x10] sm:$0xff]
        %v242 = vld [vmem:[%s1 + $0x18] sm:$0xff]
        %v243 = vld [vmem:[%s1 + $0x20] sm:$0xff]
        %v244 = vld [vmem:[%s1 + $0x28] sm:$0xff]
        %v245 = vld [vmem:[%s1 + $0x30] sm:$0xff]
        %v246 = vld [vmem:[%s1 + $0x38] sm:$0xff]
        %v247 = vld [vmem:[%s1 + $0x40] sm:$0xff]
        %v248 = vld [vmem:[%s1 + $0x48] sm:$0xff]
        %v249 = vld [vmem:[%s1 + $0x50] sm:$0xff]
        %v250 = vld [vmem:[%s1 + $0x58] sm:$0xff]
        %v251 = vld [vmem:[%s1 + $0x60] sm:$0xff]
        %v252 = vld [vmem:[%s1 + $0x68] sm:$0xff]
        %v253 = vld [vmem:[%s1 + $0x70] sm:$0xff]
        %v254 = vld [vmem:[%s1 + $0x78] sm:$0xff]
        %v255 = vld [vmem:[%s1 + $0x80] sm:$0xff]
        %v256 = vld [vmem:[%s1 + $0x88] sm:$0xff]
        %v257 = vld [vmem:[%s1 + $0x90] sm:$0xff]
        %v258 = vld [vmem:[%s1 + $0x98] sm:$0xff]
        %v259 = vld [vmem:[%s1 + $0xa0] sm:$0xff]
        %v260 = vld [vmem:[%s1 + $0xa8] sm:$0xff]
        %v261 = vld [vmem:[%s1 + $0xb0] sm:$0xff]
        %v262 = vld [vmem:[%s1 + $0xb8] sm:$0xff]
        %v263 = vld [vmem:[%s2] sm:$0x1]
        %v265 = vperm.slane %v263, 0
        %vm267 = vcmask 523264
        %v269 = vsel %vm267, %v176, 0
        %v272 = vsel %vm267, %v178, 0
        %v275 = vsel %vm267, %v180, 0
        %v278 = vsel %vm267, %v182, 0
        %v281 = vsel %vm267, %v184, 0
        %v284 = vsel %vm267, %v186, 0
        %v287 = vsel %vm267, %v188, 0
        %v290 = vsel %vm267, %v190, 0
        %v293 = vsel %vm267, %v192, 0
        %v296 = vsel %vm267, %v194, 0
        %v299 = vsel %vm267, %v196, 0
        %v302 = vsel %vm267, %v198, 0
        %v305 = vsel %vm267, %v200, 0
        %v308 = vsel %vm267, %v202, 0
        %v311 = vsel %vm267, %v204, 0
        %v314 = vsel %vm267, %v206, 0
        %v317 = vsel %vm267, %v208, 0
        %v320 = vsel %vm267, %v210, 0
        %v323 = vsel %vm267, %v212, 0
        %v326 = vsel %vm267, %v214, 0
        %v329 = vsel %vm267, %v216, 0
        %v332 = vsel %vm267, %v218, 0
        %v335 = vsel %vm267, %v220, 0
        %v338 = vsel %vm267, %v222, 0
        %v341 = vsel %vm267, %v224, 0
        %v344 = vsel %vm267, %v226, 0
        %v347 = vsel %vm267, %v228, 0
        %v350 = vsel %vm267, %v230, 0
        %v353 = vsel %vm267, %v232, 0
        %v356 = vsel %vm267, %v234, 0
        %v359 = vsel %vm267, %v236, 0
        %v362 = vsel %vm267, %v238, 0
        %364 = vmatpush.msra.mxu0 %v254
        %365 = vmatpush.msra.mxu0 %v253
        %366 = vmatpush.msra.mxu0 %v252
        %367 = vmatpush.msra.mxu0 %v251
        %368 = vmatpush.msra.mxu0 %v250
        %369 = vmatpush.msra.mxu0 %v249
        %370 = vmatpush.msra.mxu0 %v248
        %371 = vmatpush.msra.mxu0 %v247
        %372 = vmatpush.msra.mxu0 %v246
        %373 = vmatpush.msra.mxu0 %v245
        %374 = vmatpush.msra.mxu0 %v244
        %375 = vmatpush.msra.mxu0 %v243
        %376 = vmatpush.msra.mxu0 %v242
        %377 = vmatpush.msra.mxu0 %v241
        %378 = vmatpush.msra.mxu0 %v240
        %379 = vmatpush.msra.mxu0 %v239
        %380 = vmatmul.f32.gmra.mxu0 %v175
        %v381 = vpop.f32.mrf.mxu0
        %v382 = vadd.f32 %v265, %v381
        %383 = vmatmul.f32.gmra.mxu0 %v177
        %v384 = vpop.f32.mrf.mxu0
        %v385 = vadd.f32 %v265, %v384
        %386 = vmatmul.f32.gmra.mxu0 %v179
        %v387 = vpop.f32.mrf.mxu0
        %v388 = vadd.f32 %v265, %v387
        %389 = vmatmul.f32.gmra.mxu0 %v181
        %v390 = vpop.f32.mrf.mxu0
        %v391 = vadd.f32 %v265, %v390
        %392 = vmatmul.f32.gmra.mxu0 %v183
        %v393 = vpop.f32.mrf.mxu0
        %v394 = vadd.f32 %v265, %v393
        %395 = vmatmul.f32.gmra.mxu0 %v185
        %v396 = vpop.f32.mrf.mxu0
        %v397 = vadd.f32 %v265, %v396
        %398 = vmatmul.f32.gmra.mxu0 %v187
        %v399 = vpop.f32.mrf.mxu0
        %v400 = vadd.f32 %v265, %v399
        %401 = vmatmul.f32.gmra.mxu0 %v189
        %v402 = vpop.f32.mrf.mxu0
        %v403 = vadd.f32 %v265, %v402
        %404 = vmatmul.f32.gmra.mxu0 %v191
        %v405 = vpop.f32.mrf.mxu0
        %v406 = vadd.f32 %v265, %v405
        %407 = vmatmul.f32.gmra.mxu0 %v193
        %v408 = vpop.f32.mrf.mxu0
        %v409 = vadd.f32 %v265, %v408
        %410 = vmatmul.f32.gmra.mxu0 %v195
        %v411 = vpop.f32.mrf.mxu0
        %v412 = vadd.f32 %v265, %v411
        %413 = vmatmul.f32.gmra.mxu0 %v197
        %v414 = vpop.f32.mrf.mxu0
        %v415 = vadd.f32 %v265, %v414
        %416 = vmatmul.f32.gmra.mxu0 %v199
        %v417 = vpop.f32.mrf.mxu0
        %v418 = vadd.f32 %v265, %v417
        %419 = vmatmul.f32.gmra.mxu0 %v201
        %v420 = vpop.f32.mrf.mxu0
        %v421 = vadd.f32 %v265, %v420
        %422 = vmatmul.f32.gmra.mxu0 %v203
        %v423 = vpop.f32.mrf.mxu0
        %v424 = vadd.f32 %v265, %v423
        %425 = vmatmul.f32.gmra.mxu0 %v205
        %v426 = vpop.f32.mrf.mxu0
        %v427 = vadd.f32 %v265, %v426
        %428 = vmatmul.f32.gmra.mxu0 %v207
        %v429 = vpop.f32.mrf.mxu0
        %v430 = vadd.f32 %v265, %v429
        %431 = vmatmul.f32.gmra.mxu0 %v209
        %v432 = vpop.f32.mrf.mxu0
        %v433 = vadd.f32 %v265, %v432
        %434 = vmatmul.f32.gmra.mxu0 %v211
        %v435 = vpop.f32.mrf.mxu0
        %v436 = vadd.f32 %v265, %v435
        %437 = vmatmul.f32.gmra.mxu0 %v213
        %v438 = vpop.f32.mrf.mxu0
        %v439 = vadd.f32 %v265, %v438
        %440 = vmatmul.f32.gmra.mxu0 %v215
        %v441 = vpop.f32.mrf.mxu0
        %v442 = vadd.f32 %v265, %v441
        %443 = vmatmul.f32.gmra.mxu0 %v217
        %v444 = vpop.f32.mrf.mxu0
        %v445 = vadd.f32 %v265, %v444
        %446 = vmatmul.f32.gmra.mxu0 %v219
        %v447 = vpop.f32.mrf.mxu0
        %v448 = vadd.f32 %v265, %v447
        %449 = vmatmul.f32.gmra.mxu0 %v221
        %v450 = vpop.f32.mrf.mxu0
        %v451 = vadd.f32 %v265, %v450
        %452 = vmatmul.f32.gmra.mxu0 %v223
        %v453 = vpop.f32.mrf.mxu0
        %v454 = vadd.f32 %v265, %v453
        %455 = vmatmul.f32.gmra.mxu0 %v225
        %v456 = vpop.f32.mrf.mxu0
        %v457 = vadd.f32 %v265, %v456
        %458 = vmatmul.f32.gmra.mxu0 %v227
        %v459 = vpop.f32.mrf.mxu0
        %v460 = vadd.f32 %v265, %v459
        %461 = vmatmul.f32.gmra.mxu0 %v229
        %v462 = vpop.f32.mrf.mxu0
        %v463 = vadd.f32 %v265, %v462
        %464 = vmatmul.f32.gmra.mxu0 %v231
        %v465 = vpop.f32.mrf.mxu0
        %v466 = vadd.f32 %v265, %v465
        %467 = vmatmul.f32.gmra.mxu0 %v233
        %v468 = vpop.f32.mrf.mxu0
        %v469 = vadd.f32 %v265, %v468
        %470 = vmatmul.f32.gmra.mxu0 %v235
        %v471 = vpop.f32.mrf.mxu0
        %v472 = vadd.f32 %v265, %v471
        %473 = vmatmul.f32.gmra.mxu0 %v237
        %v474 = vpop.f32.mrf.mxu0
        %v475 = vadd.f32 %v265, %v474
        %476 = vdwg.mxu0
        %477 = vmatpush.msra.mxu0 0.0
        %478 = vmatpush.msra.mxu0 0.0
        %479 = vmatpush.msra.mxu0 0.0
        %480 = vmatpush.msra.mxu0 0.0
        %481 = vmatpush.msra.mxu0 0.0
        %482 = vmatpush.msra.mxu0 0.0
        %483 = vmatpush.msra.mxu0 0.0
        %484 = vmatpush.msra.mxu0 0.0
        %485 = vmatpush.msra.mxu0 %v262
        %486 = vmatpush.msra.mxu0 %v261
        %487 = vmatpush.msra.mxu0 %v260
        %488 = vmatpush.msra.mxu0 %v259
        %489 = vmatpush.msra.mxu0 %v258
        %490 = vmatpush.msra.mxu0 %v257
        %491 = vmatpush.msra.mxu0 %v256
        %492 = vmatpush.msra.mxu0 %v255
        %493 = vmatmul.f32.gmra.mxu0 %v269
        %v494 = vpop.f32.mrf.mxu0
        %v495 = vadd.f32 %v382, %v494
        %496 = vmatmul.f32.gmra.mxu0 %v272
        %v497 = vpop.f32.mrf.mxu0
        %v498 = vadd.f32 %v385, %v497
        %499 = vmatmul.f32.gmra.mxu0 %v275
        %v500 = vpop.f32.mrf.mxu0
        %v501 = vadd.f32 %v388, %v500
        %502 = vmatmul.f32.gmra.mxu0 %v278
        %v503 = vpop.f32.mrf.mxu0
        %v504 = vadd.f32 %v391, %v503
        %505 = vmatmul.f32.gmra.mxu0 %v281
        %v506 = vpop.f32.mrf.mxu0
        %v507 = vadd.f32 %v394, %v506
        %508 = vmatmul.f32.gmra.mxu0 %v284
        %v509 = vpop.f32.mrf.mxu0
        %v510 = vadd.f32 %v397, %v509
        %511 = vmatmul.f32.gmra.mxu0 %v287
        %v512 = vpop.f32.mrf.mxu0
        %v513 = vadd.f32 %v400, %v512
        %514 = vmatmul.f32.gmra.mxu0 %v290
        %v515 = vpop.f32.mrf.mxu0
        %v516 = vadd.f32 %v403, %v515
        %517 = vmatmul.f32.gmra.mxu0 %v293
        %v518 = vpop.f32.mrf.mxu0
        %v519 = vadd.f32 %v406, %v518
        %520 = vmatmul.f32.gmra.mxu0 %v296
        %v521 = vpop.f32.mrf.mxu0
        %v522 = vadd.f32 %v409, %v521
        %523 = vmatmul.f32.gmra.mxu0 %v299
        %v524 = vpop.f32.mrf.mxu0
        %v525 = vadd.f32 %v412, %v524
        %526 = vmatmul.f32.gmra.mxu0 %v302
        %v527 = vpop.f32.mrf.mxu0
        %v528 = vadd.f32 %v415, %v527
        %529 = vmatmul.f32.gmra.mxu0 %v305
        %v530 = vpop.f32.mrf.mxu0
        %v531 = vadd.f32 %v418, %v530
        %532 = vmatmul.f32.gmra.mxu0 %v308
        %v533 = vpop.f32.mrf.mxu0
        %v534 = vadd.f32 %v421, %v533
        %535 = vmatmul.f32.gmra.mxu0 %v311
        %v536 = vpop.f32.mrf.mxu0
        %v537 = vadd.f32 %v424, %v536
        %538 = vmatmul.f32.gmra.mxu0 %v314
        %v539 = vpop.f32.mrf.mxu0
        %v540 = vadd.f32 %v427, %v539
        %541 = vmatmul.f32.gmra.mxu0 %v317
        %v542 = vpop.f32.mrf.mxu0
        %v543 = vadd.f32 %v430, %v542
        %544 = vmatmul.f32.gmra.mxu0 %v320
        %v545 = vpop.f32.mrf.mxu0
        %v546 = vadd.f32 %v433, %v545
        %547 = vmatmul.f32.gmra.mxu0 %v323
        %v548 = vpop.f32.mrf.mxu0
        %v549 = vadd.f32 %v436, %v548
        %550 = vmatmul.f32.gmra.mxu0 %v326
        %v551 = vpop.f32.mrf.mxu0
        %v552 = vadd.f32 %v439, %v551
        %553 = vmatmul.f32.gmra.mxu0 %v329
        %v554 = vpop.f32.mrf.mxu0
        %v555 = vadd.f32 %v442, %v554
        %556 = vmatmul.f32.gmra.mxu0 %v332
        %v557 = vpop.f32.mrf.mxu0
        %v558 = vadd.f32 %v445, %v557
        %559 = vmatmul.f32.gmra.mxu0 %v335
        %v560 = vpop.f32.mrf.mxu0
        %v561 = vadd.f32 %v448, %v560
        %562 = vmatmul.f32.gmra.mxu0 %v338
        %v563 = vpop.f32.mrf.mxu0
        %v564 = vadd.f32 %v451, %v563
        %565 = vmatmul.f32.gmra.mxu0 %v341
        %v566 = vpop.f32.mrf.mxu0
        %v567 = vadd.f32 %v454, %v566
        %568 = vmatmul.f32.gmra.mxu0 %v344
        %v569 = vpop.f32.mrf.mxu0
        %v570 = vadd.f32 %v457, %v569
        %571 = vmatmul.f32.gmra.mxu0 %v347
        %v572 = vpop.f32.mrf.mxu0
        %v573 = vadd.f32 %v460, %v572
        %574 = vmatmul.f32.gmra.mxu0 %v350
        %v575 = vpop.f32.mrf.mxu0
        %v576 = vadd.f32 %v463, %v575
        %577 = vmatmul.f32.gmra.mxu0 %v353
        %v578 = vpop.f32.mrf.mxu0
        %v579 = vadd.f32 %v466, %v578
        %580 = vmatmul.f32.gmra.mxu0 %v356
        %v581 = vpop.f32.mrf.mxu0
        %v582 = vadd.f32 %v469, %v581
        %583 = vmatmul.f32.gmra.mxu0 %v359
        %v584 = vpop.f32.mrf.mxu0
        %v585 = vadd.f32 %v472, %v584
        %586 = vmatmul.f32.gmra.mxu0 %v362
        %v587 = vpop.f32.mrf.mxu0
        %v588 = vadd.f32 %v475, %v587
        %589 = vdwg.mxu0
        %590 = vst [vmem:[%s166] sm:$0xff] %v495
        %591 = vst [vmem:[%s166 + $0x8] sm:$0xff] %v498
        %592 = vst [vmem:[%s166 + $0x10] sm:$0xff] %v501
        %593 = vst [vmem:[%s166 + $0x18] sm:$0xff] %v504
        %594 = vst [vmem:[%s166 + $0x20] sm:$0xff] %v507
        %595 = vst [vmem:[%s166 + $0x28] sm:$0xff] %v510
        %596 = vst [vmem:[%s166 + $0x30] sm:$0xff] %v513
        %597 = vst [vmem:[%s166 + $0x38] sm:$0xff] %v516
        %598 = vst [vmem:[%s166 + $0x40] sm:$0xff] %v519
        %599 = vst [vmem:[%s166 + $0x48] sm:$0xff] %v522
        %600 = vst [vmem:[%s166 + $0x50] sm:$0xff] %v525
        %601 = vst [vmem:[%s166 + $0x58] sm:$0xff] %v528
        %602 = vst [vmem:[%s166 + $0x60] sm:$0xff] %v531
        %603 = vst [vmem:[%s166 + $0x68] sm:$0xff] %v534
        %604 = vst [vmem:[%s166 + $0x70] sm:$0xff] %v537
        %605 = vst [vmem:[%s166 + $0x78] sm:$0xff] %v540
        %606 = vst [vmem:[%s166 + $0x80] sm:$0xff] %v543
        %607 = vst [vmem:[%s166 + $0x88] sm:$0xff] %v546
        %608 = vst [vmem:[%s166 + $0x90] sm:$0xff] %v549
        %609 = vst [vmem:[%s166 + $0x98] sm:$0xff] %v552
        %610 = vst [vmem:[%s166 + $0xa0] sm:$0xff] %v555
        %611 = vst [vmem:[%s166 + $0xa8] sm:$0xff] %v558
        %612 = vst [vmem:[%s166 + $0xb0] sm:$0xff] %v561
        %613 = vst [vmem:[%s166 + $0xb8] sm:$0xff] %v564
        %614 = vst [vmem:[%s166 + $0xc0] sm:$0xff] %v567
        %615 = vst [vmem:[%s166 + $0xc8] sm:$0xff] %v570
        %616 = vst [vmem:[%s166 + $0xd0] sm:$0xff] %v573
        %617 = vst [vmem:[%s166 + $0xd8] sm:$0xff] %v576
        %618 = vst [vmem:[%s166 + $0xe0] sm:$0xff] %v579
        %619 = vst [vmem:[%s166 + $0xe8] sm:$0xff] %v582
        %620 = vst [vmem:[%s166 + $0xf0] sm:$0xff] %v585
        %621 = vst [vmem:[%s166 + $0xf8] sm:$0xff] %v588
        %s622 = sand.u32 %s93, 1
        %s623 = scalar_lea.sflag [#allocation3], %s622
        %s624 = sand.u32 %s93, 1
        %s625 = smul.addr %s624, 256
        %s626 = scalar_lea.vmem [#allocation2], %s625
        // Predicated region
        $region33: #{tpu_custom_call.1} parent=31 // pred_check
          %p627 = pneg %p103
        $region34: #{tpu_custom_call.1} parent=31 // pred_check_branch
          %629 = sbr.rel (%p627) target = $region36
        $region35: #{tpu_custom_call.1} parent=31 // pred_region
          %s630 = smul.u32 32, %s17
          %632 = vsyncadd %s623, 0
          %s633 = smul.addr %s630, 8
          %s634 = scalar_lea.hbm %s3, %s633
          %s635 = sshll.u32 %s626, 4
          %s636 = int_to_ptr.vmem [resolvable:$true] %s635
          %s637 = sshll.u32 %s634, 4
          %s638 = int_to_ptr.hbm [resolvable:$true] %s637
          %643 = dma.vmem_to_hbm [thread:$0]  %s636, 4096, %s638, %s623, 128, 128, 8
        $region36: #{tpu_custom_call.1} parent=31 // pred_fallthru
          _
      $region32: #{tpu_custom_call.1} parent=5 // pred_fallthru
        _
      %p644 = scmp.le.s32.totalorder 2, %s12
      // Predicated region
      $region37: #{tpu_custom_call.1} parent=5 // pred_check
        %p645 = pneg %p644
      $region38: #{tpu_custom_call.1} parent=5 // pred_check_branch
        %647 = sbr.rel (%p645) target = $region40
      $region39: #{tpu_custom_call.1} parent=5 // pred_region
        %s648 = ssub.s32 %s12, 2
        // Predicated region
        $region41: #{tpu_custom_call.1} parent=39 // pred_check
          %p649 = pneg %p109
        $region42: #{tpu_custom_call.1} parent=39 // pred_check_branch
          %651 = sbr.rel (%p649) target = $region44
        $region43: #{tpu_custom_call.1} parent=39 // pred_region
          %s652 = sand.u32 %s94, 1
          %s653 = scalar_lea.sflag [#allocation3], %s652
          %s654 = sand.u32 %s94, 1
          %s655 = smul.addr %s654, 256
          %s656 = scalar_lea.vmem [#allocation2], %s655
          %658 = dma.done %s653, 4096
        $region44: #{tpu_custom_call.1} parent=39 // pred_fallthru
          _
      $region40: #{tpu_custom_call.1} parent=5 // pred_fallthru
        _
    $region6: #{tpu_custom_call.1} parent=1 // loop_footer
      %s16 = sadd.s32 1, %s12
    $region7: #{tpu_custom_call.1} parent=1 // loop_footer_branch
      %11 = sbr.rel target = $region3
    $region8: #{tpu_custom_call.1} parent=1 // loop_exit
      _
    %659 = vsyncpa [#allocation3], 1
    %s660 = scalar_lea.sflag [#allocation3], 1
    %661 = vsyncpa %s660, 1

</llo_original>
